<compile_context>
chip_gen: v7x
topology: tpu7x:2x2x1
jax: 0.10.0
libtpu: 0.0.40
codegen_flags: <defaults>
</compile_context>

<pallas_src>
import jax
import jax.numpy as jnp
from jax.experimental import pallas as pl
from jax.experimental.pallas import tpu as pltpu


# ----------------------------------------------------------------------------
# Pallas kernel: fused (ctr|cvr) MLP + sigmoid + pCTCVR + masked BCE partials
# ----------------------------------------------------------------------------
def essm_kernel(hidden_ref, labels_ref,
                w1_ref, b1_ref, w2_ref, b2_ref, w3_ref, b3_ref,
                preds_ref, loss_ref):
    # hidden_ref : (H, TILE_B)   transposed hidden (batch on lanes)
    # labels_ref : (3, TILE_B)   rows = [task1_label, task2_label, valid_mask]
    # w*/b*      : fused tower params (transposed / block-diagonal), resident
    # preds_ref  : (2, TILE_B)   rows = [click (=ctr*cvr), conversion]
    # loss_ref   : (1, 2, 1)     per-tile sums of the (unnormalised) BCE terms
    h_t = hidden_ref[...]                                              # (H, TB)

    # Fused 3-layer MLP for both towers; block-diagonal W2/W3 keep the towers
    # independent.  (Dropout is identity in eval / inference mode.)
    x = jnp.dot(w1_ref[...], h_t, preferred_element_type=jnp.float32) + b1_ref[...]
    x = jnp.maximum(x, 0.0)                                            # ReLU
    x = jnp.dot(w2_ref[...], x, preferred_element_type=jnp.float32) + b2_ref[...]
    x = jnp.maximum(x, 0.0)                                            # ReLU
    logits = jnp.dot(w3_ref[...], x, preferred_element_type=jnp.float32) + b3_ref[...]
    probs = jax.nn.sigmoid(logits)                                     # (2, TB)

    ctr = probs[0:1, :]
    cvr = probs[1:2, :]
    click = ctr * cvr                                                  # pCTCVR

    # Lane-dense prediction slab: row 0 = click, row 1 = conversion.
    preds_ref[...] = jnp.concatenate([click, cvr], axis=0)             # (2, TB)

    lab = labels_ref[...]
    y1 = lab[0:1, :]
    y2 = lab[1:2, :]
    valid = lab[2:3, :]

    def bce_terms(p, y):
        # matches torch BCE: log terms clamped at -100 (pre-mask, so padded
        # lanes never produce inf * 0)
        logp = jnp.maximum(jnp.log(p), -100.0)
        log1mp = jnp.maximum(jnp.log(1.0 - p), -100.0)
        return valid * (y * logp + (1.0 - y) * log1mp)                 # (1, TB)

    terms = jnp.concatenate([bce_terms(click, y1), bce_terms(cvr, y2)], axis=0)
    loss_ref[...] = jnp.sum(terms, axis=1, keepdims=True)[None, :, :]  # (1,2,1)


# ----------------------------------------------------------------------------
# Wrapper: param fusion, batch tiling, loss finalisation
# ----------------------------------------------------------------------------
def _block_diag(a, b):
    za = jnp.zeros((a.shape[0], b.shape[1]), a.dtype)
    zb = jnp.zeros((b.shape[0], a.shape[1]), b.dtype)
    return jnp.concatenate(
        [jnp.concatenate([a, za], axis=1),
         jnp.concatenate([zb, b], axis=1)], axis=0)


def _fuse_tower_params(ctr_params, cvr_params):
    w1c, b1c, w2c, b2c, w3c, b3c = ctr_params
    w1v, b1v, w2v, b2v, w3v, b3v = cvr_params
    W1 = jnp.concatenate([w1c.T, w1v.T], axis=0)     # (2*h1, H)
    B1 = jnp.concatenate([b1c.T, b1v.T], axis=0)     # (2*h1, 1)
    W2 = _block_diag(w2c.T, w2v.T)                   # (2*h2, 2*h1)
    B2 = jnp.concatenate([b2c.T, b2v.T], axis=0)     # (2*h2, 1)
    W3 = _block_diag(w3c.T, w3v.T)                   # (2, 2*h2)
    B3 = jnp.concatenate([b3c.T, b3v.T], axis=0)     # (2, 1)
    return W1, B1, W2, B2, W3, B3


def _round_up(x, m):
    return ((x + m - 1) // m) * m


def _round_down(x, m):
    return (x // m) * m


def _pick_tile_b(B, H):
    # Keep the double-buffered hidden tiles comfortably inside the default
    # scoped-VMEM budget (weights are tiny and resident).
    budget_bytes = 24 * 1024 * 1024
    bytes_per_col = (H + 3 + 2) * 4          # hidden + labels + preds columns
    cols = max(128, _round_down(budget_bytes // (2 * bytes_per_col), 128))
    tile = min(2048, cols)
    tile = min(tile, _round_up(B, 128))      # don't over-pad tiny batches
    return tile


@jax.jit
def essm_forward(sparse_ids, emb_tables, ctr_params, cvr_params, y1, y2):
    """sparse_ids: (B, F) int32; emb_tables: list of (V_f, D) float32;
    y1/y2: (B, 1) float32 labels."""
    B = sparse_ids.shape[0]

    # Embedding lookup (glue, plain JAX gather) directly into transposed
    # (H, B) layout: column-gather from the transposed (small) tables, so no
    # batch-sized transpose is materialised in HBM.
    embs_t = [tbl.T[:, sparse_ids[:, f]].astype(jnp.float32)
              for f, tbl in enumerate(emb_tables)]                      # each (D, B)
    hidden_t = jnp.concatenate(embs_t, axis=0)                          # (H, B)
    H = hidden_t.shape[0]

    # Batch tiling: big lane-aligned tiles, pad + mask the ragged remainder.
    TILE_B = _pick_tile_b(B, H)
    B_pad = _round_up(B, TILE_B)
    num_tiles = B_pad // TILE_B
    pad = B_pad - B

    hidden_t = jnp.pad(hidden_t, ((0, 0), (0, pad)))                    # (H, B_pad)
    labels = jnp.concatenate(
        [y1.reshape(1, B).astype(jnp.float32),
         y2.reshape(1, B).astype(jnp.float32),
         jnp.ones((1, B), jnp.float32)], axis=0)                        # (3, B)
    labels = jnp.pad(labels, ((0, 0), (0, pad)))                        # (3, B_pad)

    W1, B1, W2, B2, W3, B3 = _fuse_tower_params(ctr_params, cvr_params)

    preds, loss_partials = pl.pallas_call(
        essm_kernel,
        grid=(num_tiles,),
        out_shape=(
            jax.ShapeDtypeStruct((2, B_pad), jnp.float32),         # [click; conversion]
            jax.ShapeDtypeStruct((num_tiles, 2, 1), jnp.float32),  # per-tile BCE sums
        ),
        in_specs=[
            pl.BlockSpec((H, TILE_B), lambda i: (0, i)),          # hidden_t (pipelined)
            pl.BlockSpec((3, TILE_B), lambda i: (0, i)),          # labels   (pipelined)
            pl.BlockSpec(W1.shape, lambda i: (0, 0)),             # weights: resident,
            pl.BlockSpec(B1.shape, lambda i: (0, 0)),             # DMA'd once
            pl.BlockSpec(W2.shape, lambda i: (0, 0)),
            pl.BlockSpec(B2.shape, lambda i: (0, 0)),
            pl.BlockSpec(W3.shape, lambda i: (0, 0)),
            pl.BlockSpec(B3.shape, lambda i: (0, 0)),
        ],
        out_specs=(
            pl.BlockSpec((2, TILE_B), lambda i: (0, i)),          # lane-dense preds
            pl.BlockSpec((1, 2, 1), lambda i: (i, 0, 0)),         # per-tile loss sums
        ),
        compiler_params=pltpu.CompilerParams(
            dimension_semantics=("parallel",)),                   # v7x megacore
    )(hidden_t, labels, W1, B1, W2, B2, W3, B3)

    click = preds[0, :B].reshape(B, 1)
    conversion = preds[1, :B].reshape(B, 1)

    # Finalise the means over the TRUE batch size and combine (weight = 0.5).
    ctr_loss = -jnp.sum(loss_partials[:, 0, 0]) / B
    cvr_loss = -jnp.sum(loss_partials[:, 1, 0]) / B
    loss = cvr_loss + 0.5 * ctr_loss

    return {"task1_pred": click, "task2_pred": conversion, "loss": loss}


# ----------------------------------------------------------------------------
# Pure-JAX reference (for sanity check)
# ----------------------------------------------------------------------------
def essm_reference(sparse_ids, emb_tables, ctr_params, cvr_params, y1, y2):
    embs = [tbl[sparse_ids[:, f]] for f, tbl in enumerate(emb_tables)]
    hidden = jnp.concatenate(embs, axis=-1).astype(jnp.float32)

    def mlp(h, params):
        w1, b1, w2, b2, w3, b3 = params
        x = jnp.maximum(h @ w1 + b1, 0.0)
        x = jnp.maximum(x @ w2 + b2, 0.0)
        return x @ w3 + b3

    ctr = jax.nn.sigmoid(mlp(hidden, ctr_params))
    cvr = jax.nn.sigmoid(mlp(hidden, cvr_params))
    click = ctr * cvr

    def bce(p, y):
        logp = jnp.maximum(jnp.log(p), -100.0)
        log1mp = jnp.maximum(jnp.log(1.0 - p), -100.0)
        return -jnp.mean(y * logp + (1.0 - y) * log1mp)

    loss = bce(cvr, y2) + 0.5 * bce(click, y1)
    return {"task1_pred": click, "task2_pred": cvr, "loss": loss}


# ----------------------------------------------------------------------------
# Deterministic parameter / input construction
# ----------------------------------------------------------------------------
def make_mlp_params(key, input_dim, hidden_units, output_dim):
    dims = [input_dim] + list(hidden_units) + [output_dim]
    params = []
    for i in range(len(dims) - 1):
        key, kw, kb = jax.random.split(key, 3)
        w = (jax.random.normal(kw, (dims[i], dims[i + 1]), jnp.float32)
             * (1.0 / jnp.sqrt(dims[i])))
        b = jax.random.normal(kb, (1, dims[i + 1]), jnp.float32) * 0.01
        params += [w, b]
    return params


if __name__ == "__main__":
    # Small synthetic "enc_dict": 5 sparse features, embedding_dim=8
    B = 8
    embedding_dim = 8
    vocab_sizes = [10, 20, 15, 12, 8]               # num_sparse_fea = 5
    num_sparse_fea = len(vocab_sizes)
    hidden_size = num_sparse_fea * embedding_dim    # 40
    hidden_dim = [32, 16]

    key = jax.random.PRNGKey(0)
    key, *tkeys = jax.random.split(key, num_sparse_fea + 1)
    emb_tables = [
        jax.random.normal(tkeys[f], (vocab_sizes[f], embedding_dim), jnp.float32) * 0.1
        for f in range(num_sparse_fea)
    ]

    key, kc, kv, kid, k1, k2 = jax.random.split(key, 6)
    ctr_params = make_mlp_params(kc, hidden_size, hidden_dim, 1)
    cvr_params = make_mlp_params(kv, hidden_size, hidden_dim, 1)

    sparse_ids = jnp.stack(
        [jax.random.randint(jax.random.fold_in(kid, f), (B,), 0, vocab_sizes[f])
         for f in range(num_sparse_fea)], axis=1).astype(jnp.int32)          # (B, F)
    task1_label = jax.random.bernoulli(k1, 0.5, (B, 1)).astype(jnp.float32)  # click
    task2_label = jax.random.bernoulli(k2, 0.3, (B, 1)).astype(jnp.float32)  # conversion

    out = essm_forward(sparse_ids, emb_tables, ctr_params, cvr_params,
                       task1_label, task2_label)
    jax.block_until_ready(out)

    ref = essm_reference(sparse_ids, emb_tables, ctr_params, cvr_params,
                         task1_label, task2_label)
    assert jnp.allclose(out["task1_pred"], ref["task1_pred"], atol=1e-5)
    assert jnp.allclose(out["task2_pred"], ref["task2_pred"], atol=1e-5)
    assert jnp.allclose(out["loss"], ref["loss"], atol=1e-5)

    print("KERNEL_OK")
</pallas_src>

<mosaic_0001>
module attributes {stable_mosaic.version = 11 : i64} {
  func.func @essm_kernel(%arg0: i32, %arg1: memref<40x128xf32, #tpu.memory_space<vmem>>, %arg2: memref<3x128xf32, #tpu.memory_space<vmem>>, %arg3: memref<64x40xf32, #tpu.memory_space<vmem>>, %arg4: memref<64x1xf32, #tpu.memory_space<vmem>>, %arg5: memref<32x64xf32, #tpu.memory_space<vmem>>, %arg6: memref<32x1xf32, #tpu.memory_space<vmem>>, %arg7: memref<2x32xf32, #tpu.memory_space<vmem>>, %arg8: memref<2x1xf32, #tpu.memory_space<vmem>>, %arg9: memref<2x128xf32, #tpu.memory_space<vmem>>, %arg10: memref<1x2x1xf32, #tpu.memory_space<vmem>>) attributes {dimension_semantics = [#tpu.dimension_semantics<parallel>], iteration_bounds = array<i64: 1>, scalar_prefetch = 0 : i64, scratch_operands = 0 : i64, tpu.core_type = #tpu.core_type<tc>, window_params = [{transform_indices = @transform_0, window_bounds = array<i64: 40, 128>}, {transform_indices = @transform_1, window_bounds = array<i64: 3, 128>}, {pipeline_mode = #tpu.pipeline_mode<synchronous>, transform_indices = @transform_2, window_bounds = array<i64: 64, 40>}, {pipeline_mode = #tpu.pipeline_mode<synchronous>, transform_indices = @transform_3, window_bounds = array<i64: 64, 1>}, {pipeline_mode = #tpu.pipeline_mode<synchronous>, transform_indices = @transform_4, window_bounds = array<i64: 32, 64>}, {pipeline_mode = #tpu.pipeline_mode<synchronous>, transform_indices = @transform_5, window_bounds = array<i64: 32, 1>}, {pipeline_mode = #tpu.pipeline_mode<synchronous>, transform_indices = @transform_6, window_bounds = array<i64: 2, 32>}, {pipeline_mode = #tpu.pipeline_mode<synchronous>, transform_indices = @transform_7, window_bounds = array<i64: 2, 1>}, {transform_indices = @transform_8, window_bounds = array<i64: 2, 128>}, {transform_indices = @transform_9, window_bounds = array<i64: 1, 2, 1>}]} {
    %c0 = arith.constant 0 : index
    %c0_0 = arith.constant 0 : index
    %0 = vector.load %arg1[%c0, %c0_0] : memref<40x128xf32, #tpu.memory_space<vmem>>, vector<40x128xf32>
    %c0_1 = arith.constant 0 : index
    %c0_2 = arith.constant 0 : index
    %1 = vector.load %arg3[%c0_1, %c0_2] : memref<64x40xf32, #tpu.memory_space<vmem>>, vector<64x40xf32>
    %cst = arith.constant dense<0.000000e+00> : vector<64x128xf32>
    %2 = tpu.matmul %1, %0, %cst {dimension_numbers = #tpu.dot_dimension_numbers<[1], [0], [0], [1], [0, 0, 1, 1], [], []>} : vector<64x40xf32>, vector<40x128xf32>, vector<64x128xf32> -> vector<64x128xf32>
    %c0_3 = arith.constant 0 : index
    %c0_4 = arith.constant 0 : index
    %3 = vector.load %arg4[%c0_3, %c0_4] : memref<64x1xf32, #tpu.memory_space<vmem>>, vector<64x1xf32>
    %4 = vector.broadcast %3 : vector<64x1xf32> to vector<64x128xf32>
    %5 = arith.addf %2, %4 : vector<64x128xf32>
    %cst_5 = arith.constant 0.000000e+00 : f32
    %6 = vector.broadcast %cst_5 : f32 to vector<64x128xf32>
    %7 = arith.maximumf %5, %6 : vector<64x128xf32>
    %c0_6 = arith.constant 0 : index
    %c0_7 = arith.constant 0 : index
    %8 = vector.load %arg5[%c0_6, %c0_7] : memref<32x64xf32, #tpu.memory_space<vmem>>, vector<32x64xf32>
    %cst_8 = arith.constant dense<0.000000e+00> : vector<32x128xf32>
    %9 = tpu.matmul %8, %7, %cst_8 {dimension_numbers = #tpu.dot_dimension_numbers<[1], [0], [0], [1], [0, 0, 1, 1], [], []>} : vector<32x64xf32>, vector<64x128xf32>, vector<32x128xf32> -> vector<32x128xf32>
    %c0_9 = arith.constant 0 : index
    %c0_10 = arith.constant 0 : index
    %10 = vector.load %arg6[%c0_9, %c0_10] : memref<32x1xf32, #tpu.memory_space<vmem>>, vector<32x1xf32>
    %11 = vector.broadcast %10 : vector<32x1xf32> to vector<32x128xf32>
    %12 = arith.addf %9, %11 : vector<32x128xf32>
    %cst_11 = arith.constant 0.000000e+00 : f32
    %13 = vector.broadcast %cst_11 : f32 to vector<32x128xf32>
    %14 = arith.maximumf %12, %13 : vector<32x128xf32>
    %c0_12 = arith.constant 0 : index
    %c0_13 = arith.constant 0 : index
    %15 = vector.load %arg7[%c0_12, %c0_13] : memref<2x32xf32, #tpu.memory_space<vmem>>, vector<2x32xf32>
    %cst_14 = arith.constant dense<0.000000e+00> : vector<2x128xf32>
    %16 = tpu.matmul %15, %14, %cst_14 {dimension_numbers = #tpu.dot_dimension_numbers<[1], [0], [0], [1], [0, 0, 1, 1], [], []>} : vector<2x32xf32>, vector<32x128xf32>, vector<2x128xf32> -> vector<2x128xf32>
    %c0_15 = arith.constant 0 : index
    %c0_16 = arith.constant 0 : index
    %17 = vector.load %arg8[%c0_15, %c0_16] : memref<2x1xf32, #tpu.memory_space<vmem>>, vector<2x1xf32>
    %18 = vector.broadcast %17 : vector<2x1xf32> to vector<2x128xf32>
    %19 = arith.addf %16, %18 : vector<2x128xf32>
    %20 = arith.negf %19 : vector<2x128xf32>
    %21 = math.exp %20 : vector<2x128xf32>
    %cst_17 = arith.constant 1.000000e+00 : f32
    %22 = vector.broadcast %cst_17 : f32 to vector<2x128xf32>
    %23 = arith.addf %22, %21 : vector<2x128xf32>
    %24 = arith.divf %22, %23 : vector<2x128xf32>
    %25 = vector.extract_strided_slice %24 {offsets = [0, 0], sizes = [1, 128], strides = [1, 1]} : vector<2x128xf32> to vector<1x128xf32>
    %26 = vector.extract_strided_slice %24 {offsets = [1, 0], sizes = [1, 128], strides = [1, 1]} : vector<2x128xf32> to vector<1x128xf32>
    %27 = arith.mulf %25, %26 : vector<1x128xf32>
    %28 = tpu.concatenate %27, %26 in 0 : vector<1x128xf32>, vector<1x128xf32> -> vector<2x128xf32>
    %c0_18 = arith.constant 0 : index
    %c0_19 = arith.constant 0 : index
    %29 = vector.load %arg9[%c0_18, %c0_19] : memref<2x128xf32, #tpu.memory_space<vmem>>, vector<2x128xf32>
    tpu.vector_store %arg9[%c0_18, %c0_19], %28 {strides = array<i32>} : memref<2x128xf32, #tpu.memory_space<vmem>>, vector<2x128xf32>,
    %c0_20 = arith.constant 0 : index
    %c0_21 = arith.constant 0 : index
    %30 = vector.load %arg2[%c0_20, %c0_21] : memref<3x128xf32, #tpu.memory_space<vmem>>, vector<3x128xf32>
    %31 = vector.extract_strided_slice %30 {offsets = [0, 0], sizes = [1, 128], strides = [1, 1]} : vector<3x128xf32> to vector<1x128xf32>
    %32 = vector.extract_strided_slice %30 {offsets = [1, 0], sizes = [1, 128], strides = [1, 1]} : vector<3x128xf32> to vector<1x128xf32>
    %33 = vector.extract_strided_slice %30 {offsets = [2, 0], sizes = [1, 128], strides = [1, 1]} : vector<3x128xf32> to vector<1x128xf32>
    %34 = math.log %27 : vector<1x128xf32>
    %cst_22 = arith.constant -1.000000e+02 : f32
    %35 = vector.broadcast %cst_22 : f32 to vector<1x128xf32>
    %36 = arith.maximumf %34, %35 : vector<1x128xf32>
    %cst_23 = arith.constant 1.000000e+00 : f32
    %37 = vector.broadcast %cst_23 : f32 to vector<1x128xf32>
    %38 = arith.subf %37, %27 : vector<1x128xf32>
    %39 = math.log %38 : vector<1x128xf32>
    %cst_24 = arith.constant -1.000000e+02 : f32
    %40 = vector.broadcast %cst_24 : f32 to vector<1x128xf32>
    %41 = arith.maximumf %39, %40 : vector<1x128xf32>
    %42 = arith.mulf %31, %36 : vector<1x128xf32>
    %cst_25 = arith.constant 1.000000e+00 : f32
    %43 = vector.broadcast %cst_25 : f32 to vector<1x128xf32>
    %44 = arith.subf %43, %31 : vector<1x128xf32>
    %45 = arith.mulf %44, %41 : vector<1x128xf32>
    %46 = arith.addf %42, %45 : vector<1x128xf32>
    %47 = arith.mulf %33, %46 : vector<1x128xf32>
    %48 = math.log %26 : vector<1x128xf32>
    %cst_26 = arith.constant -1.000000e+02 : f32
    %49 = vector.broadcast %cst_26 : f32 to vector<1x128xf32>
    %50 = arith.maximumf %48, %49 : vector<1x128xf32>
    %cst_27 = arith.constant 1.000000e+00 : f32
    %51 = vector.broadcast %cst_27 : f32 to vector<1x128xf32>
    %52 = arith.subf %51, %26 : vector<1x128xf32>
    %53 = math.log %52 : vector<1x128xf32>
    %cst_28 = arith.constant -1.000000e+02 : f32
    %54 = vector.broadcast %cst_28 : f32 to vector<1x128xf32>
    %55 = arith.maximumf %53, %54 : vector<1x128xf32>
    %56 = arith.mulf %32, %50 : vector<1x128xf32>
    %cst_29 = arith.constant 1.000000e+00 : f32
    %57 = vector.broadcast %cst_29 : f32 to vector<1x128xf32>
    %58 = arith.subf %57, %32 : vector<1x128xf32>
    %59 = arith.mulf %58, %55 : vector<1x128xf32>
    %60 = arith.addf %56, %59 : vector<1x128xf32>
    %61 = arith.mulf %33, %60 : vector<1x128xf32>
    %62 = tpu.concatenate %47, %61 in 0 : vector<1x128xf32>, vector<1x128xf32> -> vector<2x128xf32>
    %cst_30 = arith.constant dense<0.000000e+00> : vector<2xf32>
    %63 = vector.multi_reduction <add>, %62, %cst_30 [1] : vector<2x128xf32> to vector<2xf32>
    %64 = vector.shape_cast %63 : vector<2xf32> to vector<2x1xf32>
    %65 = vector.shape_cast %64 : vector<2x1xf32> to vector<1x2x1xf32>
    %c0_31 = arith.constant 0 : index
    %c0_32 = arith.constant 0 : index
    %c0_33 = arith.constant 0 : index
    %66 = vector.load %arg10[%c0_31, %c0_32, %c0_33] : memref<1x2x1xf32, #tpu.memory_space<vmem>>, vector<1x2x1xf32>
    tpu.vector_store %arg10[%c0_31, %c0_32, %c0_33], %65 {strides = array<i32>} : memref<1x2x1xf32, #tpu.memory_space<vmem>>, vector<1x2x1xf32>,
    return
  }
  func.func @transform_0(%arg0: i32) -> (i32, i32) {
    %c0_i32 = arith.constant 0 : i32
    %c0_i32_0 = arith.constant 0 : i32
    return %c0_i32, %arg0 : i32, i32
  }
  func.func @transform_1(%arg0: i32) -> (i32, i32) {
    %c0_i32 = arith.constant 0 : i32
    %c0_i32_0 = arith.constant 0 : i32
    return %c0_i32, %arg0 : i32, i32
  }
  func.func @transform_2(%arg0: i32) -> (i32, i32) {
    %c0_i32 = arith.constant 0 : i32
    %c0_i32_0 = arith.constant 0 : i32
    %c0_i32_1 = arith.constant 0 : i32
    return %c0_i32, %c0_i32_0 : i32, i32
  }
  func.func @transform_3(%arg0: i32) -> (i32, i32) {
    %c0_i32 = arith.constant 0 : i32
    %c0_i32_0 = arith.constant 0 : i32
    %c0_i32_1 = arith.constant 0 : i32
    return %c0_i32, %c0_i32_0 : i32, i32
  }
  func.func @transform_4(%arg0: i32) -> (i32, i32) {
    %c0_i32 = arith.constant 0 : i32
    %c0_i32_0 = arith.constant 0 : i32
    %c0_i32_1 = arith.constant 0 : i32
    return %c0_i32, %c0_i32_0 : i32, i32
  }
  func.func @transform_5(%arg0: i32) -> (i32, i32) {
    %c0_i32 = arith.constant 0 : i32
    %c0_i32_0 = arith.constant 0 : i32
    %c0_i32_1 = arith.constant 0 : i32
    return %c0_i32, %c0_i32_0 : i32, i32
  }
  func.func @transform_6(%arg0: i32) -> (i32, i32) {
    %c0_i32 = arith.constant 0 : i32
    %c0_i32_0 = arith.constant 0 : i32
    %c0_i32_1 = arith.constant 0 : i32
    return %c0_i32, %c0_i32_0 : i32, i32
  }
  func.func @transform_7(%arg0: i32) -> (i32, i32) {
    %c0_i32 = arith.constant 0 : i32
    %c0_i32_0 = arith.constant 0 : i32
    %c0_i32_1 = arith.constant 0 : i32
    return %c0_i32, %c0_i32_0 : i32, i32
  }
  func.func @transform_8(%arg0: i32) -> (i32, i32) {
    %c0_i32 = arith.constant 0 : i32
    %c0_i32_0 = arith.constant 0 : i32
    return %c0_i32, %arg0 : i32, i32
  }
  func.func @transform_9(%arg0: i32) -> (i32, i32, i32) {
    %c0_i32 = arith.constant 0 : i32
    %c0_i32_0 = arith.constant 0 : i32
    %c0_i32_1 = arith.constant 0 : i32
    return %arg0, %c0_i32, %c0_i32_0 : i32, i32, i32
  }
}

</mosaic_0001>

<llo_original>
// kernel: essm_forward.1
$region0: #{essm_forward.1}
  #allocation0 [shape = 'u32[]', space=smem, size = 0x4, offset = 0x4, fixed_abs, tag = 'smem constant byte address 0x4 - core index']
  #allocation1 [shape = 'u32[144,128]{1,0:T(1,128)}', space=vmem, size = 0x12000, scoped, tag = 'internal scratch']
  %s0 = inlined_call_operand.vmem [shape: f32[40,128], index: 0, kind: input, shape index: {}]
  %s1 = inlined_call_operand.vmem [shape: f32[3,128], index: 1, kind: input, shape index: {}]
  %s2 = inlined_call_operand.vmem [shape: f32[64,40], index: 2, kind: input, shape index: {}]
  %s3 = inlined_call_operand.vmem [shape: f32[64,1], index: 3, kind: input, shape index: {}]
  %s4 = inlined_call_operand.vmem [shape: f32[32,64], index: 4, kind: input, shape index: {}]
  %s5 = inlined_call_operand.vmem [shape: f32[32,1], index: 5, kind: input, shape index: {}]
  %s6 = inlined_call_operand.vmem [shape: f32[2,32], index: 6, kind: input, shape index: {}]
  %s7 = inlined_call_operand.vmem [shape: f32[2,1], index: 7, kind: input, shape index: {}]
  %s8 = inlined_call_operand.vmem [shape: f32[2,128], index: 8, kind: output, shape index: {0}]
  %s9 = inlined_call_operand.vmem [shape: f32[1,2,1], index: 9, kind: output, shape index: {1}]
  %10 = xla_tuple %s8, %s9
  %s11 = sld [smem:[#allocation0]]
  $region50: #{essm_forward.1} parent=0
    _
  %s13 = ssub.s32 1, %s11
  %s14 = scalar_select 0, %s13, %s11
  // Predicated region
  $region2: #{essm_forward.1} parent=0 // pred_check
    _
  $region3: #{essm_forward.1} parent=0 // pred_check_branch
    %16 = sbr.rel (0) target = $region5
  $region4: #{essm_forward.1} parent=0 // pred_region
    _
  $region5: #{essm_forward.1} parent=0 // pred_fallthru
    _
  // Predicated region
  $region6: #{essm_forward.1} parent=0 // pred_check
    _
  $region7: #{essm_forward.1} parent=0 // pred_check_branch
    %18 = sbr.rel (0) target = $region9
  $region8: #{essm_forward.1} parent=0 // pred_region
    _
  $region9: #{essm_forward.1} parent=0 // pred_fallthru
    _
  // Predicated region
  $region10: #{essm_forward.1} parent=0 // pred_check
    _
  $region11: #{essm_forward.1} parent=0 // pred_check_branch
    %20 = sbr.rel (0) target = $region13
  $region12: #{essm_forward.1} parent=0 // pred_region
    _
  $region13: #{essm_forward.1} parent=0 // pred_fallthru
    _
  // Predicated region
  $region14: #{essm_forward.1} parent=0 // pred_check
    _
  $region15: #{essm_forward.1} parent=0 // pred_check_branch
    %22 = sbr.rel (0) target = $region17
  $region16: #{essm_forward.1} parent=0 // pred_region
    _
  $region17: #{essm_forward.1} parent=0 // pred_fallthru
    _
  // Predicated region
  $region18: #{essm_forward.1} parent=0 // pred_check
    _
  $region19: #{essm_forward.1} parent=0 // pred_check_branch
    %24 = sbr.rel (0) target = $region21
  $region20: #{essm_forward.1} parent=0 // pred_region
    _
  $region21: #{essm_forward.1} parent=0 // pred_fallthru
    _
  // Predicated region
  $region22: #{essm_forward.1} parent=0 // pred_check
    _
  $region23: #{essm_forward.1} parent=0 // pred_check_branch
    %26 = sbr.rel (0) target = $region25
  $region24: #{essm_forward.1} parent=0 // pred_region
    _
  $region25: #{essm_forward.1} parent=0 // pred_fallthru
    _
  // Predicated region
  $region26: #{essm_forward.1} parent=0 // pred_check
    _
  $region27: #{essm_forward.1} parent=0 // pred_check_branch
    %28 = sbr.rel (0) target = $region29
  $region28: #{essm_forward.1} parent=0 // pred_region
    _
  $region29: #{essm_forward.1} parent=0 // pred_fallthru
    _
  // Predicated region
  $region30: #{essm_forward.1} parent=0 // pred_check
    _
  $region31: #{essm_forward.1} parent=0 // pred_check_branch
    %30 = sbr.rel (0) target = $region33
  $region32: #{essm_forward.1} parent=0 // pred_region
    _
  $region33: #{essm_forward.1} parent=0 // pred_fallthru
    _
  %v31 = vld [vmem:[%s0] sm:$0xff]
  %v32 = vld [vmem:[%s0 + $0x8] sm:$0xff]
  %v33 = vld [vmem:[%s0 + $0x10] sm:$0xff]
  %v34 = vld [vmem:[%s0 + $0x18] sm:$0xff]
  %v35 = vld [vmem:[%s0 + $0x20] sm:$0xff]
  %v36 = vld [vmem:[%s2] sm:$0xff]
  %v37 = vld [vmem:[%s2 + $0x8] sm:$0xff]
  %v38 = vld [vmem:[%s2 + $0x10] sm:$0xff]
  %v39 = vld [vmem:[%s2 + $0x18] sm:$0xff]
  %v40 = vld [vmem:[%s2 + $0x20] sm:$0xff]
  %v41 = vld [vmem:[%s2 + $0x28] sm:$0xff]
  %v42 = vld [vmem:[%s2 + $0x30] sm:$0xff]
  %v43 = vld [vmem:[%s2 + $0x38] sm:$0xff]
  %v44 = vld [vmem:[%s3] sm:$0xff]
  %v45 = vld [vmem:[%s3 + $0x8] sm:$0xff]
  %v46 = vld [vmem:[%s3 + $0x10] sm:$0xff]
  %v47 = vld [vmem:[%s3 + $0x18] sm:$0xff]
  %v48 = vld [vmem:[%s3 + $0x20] sm:$0xff]
  %v49 = vld [vmem:[%s3 + $0x28] sm:$0xff]
  %v50 = vld [vmem:[%s3 + $0x30] sm:$0xff]
  %v51 = vld [vmem:[%s3 + $0x38] sm:$0xff]
  %53 = vset.pattern.permute.xlu0 0
  %54 = vperm.xlu0 %53, %v44
  %v55 = vpop.permute.xlu0 %54
  %58 = vset.pattern.permute.xlu0 0
  %59 = vperm.xlu0 %58, %v45
  %v60 = vpop.permute.xlu0 %59
  %63 = vset.pattern.permute.xlu0 0
  %64 = vperm.xlu0 %63, %v46
  %v65 = vpop.permute.xlu0 %64
  %68 = vset.pattern.permute.xlu0 0
  %69 = vperm.xlu0 %68, %v47
  %v70 = vpop.permute.xlu0 %69
  %73 = vset.pattern.permute.xlu0 0
  %74 = vperm.xlu0 %73, %v48
  %v75 = vpop.permute.xlu0 %74
  %78 = vset.pattern.permute.xlu0 0
  %79 = vperm.xlu0 %78, %v49
  %v80 = vpop.permute.xlu0 %79
  %83 = vset.pattern.permute.xlu0 0
  %84 = vperm.xlu0 %83, %v50
  %v85 = vpop.permute.xlu0 %84
  %88 = vset.pattern.permute.xlu0 0
  %89 = vperm.xlu0 %88, %v51
  %v90 = vpop.permute.xlu0 %89
  %vm92 = vcmask 326656
  %v94 = vsel %vm92, %v36, 0
  %v97 = vsel %vm92, %v37, 0
  %v100 = vsel %vm92, %v38, 0
  %v103 = vsel %vm92, %v39, 0
  %v106 = vsel %vm92, %v40, 0
  %v109 = vsel %vm92, %v41, 0
  %v112 = vsel %vm92, %v42, 0
  %v115 = vsel %vm92, %v43, 0
  %117 = vmatprep.subr.mxu0 0.0
  %118 = vmatpush1.msra.mxu0 %v31
  %119 = vmatprep.subr.mxu0 0.0
  %120 = vmatpush1.msra.mxu0 %v32
  %121 = vmatprep.subr.mxu0 0.0
  %122 = vmatpush1.msra.mxu0 %v33
  %123 = vmatprep.subr.mxu0 0.0
  %124 = vmatpush1.msra.mxu0 %v34
  %125 = vmatprep.subr.mxu0 0.0
  %126 = vmatpush1.msra.mxu0 %v35
  %127 = vmatprep.subr.mxu0 0.0
  %128 = vmatpush1.msra.mxu0 0.0
  %129 = vmatprep.subr.mxu0 0.0
  %130 = vmatpush1.msra.mxu0 0.0
  %131 = vmatprep.subr.mxu0 0.0
  %132 = vmatpush1.msra.mxu0 0.0
  %133 = vmatprep.subr.mxu0 0.0
  %134 = vmatpush1.msra.mxu0 0.0
  %135 = vmatprep.subr.mxu0 0.0
  %136 = vmatpush1.msra.mxu0 0.0
  %137 = vmatprep.subr.mxu0 0.0
  %138 = vmatpush1.msra.mxu0 0.0
  %139 = vmatprep.subr.mxu0 0.0
  %140 = vmatpush1.msra.mxu0 0.0
  %141 = vmatprep.subr.mxu0 0.0
  %142 = vmatpush1.msra.mxu0 0.0
  %143 = vmatprep.subr.mxu0 0.0
  %144 = vmatpush1.msra.mxu0 0.0
  %145 = vmatprep.subr.mxu0 0.0
  %146 = vmatpush1.msra.mxu0 0.0
  %147 = vmatprep.subr.mxu0 0.0
  %148 = vmatpush1.msra.mxu0 0.0
  %149 = vmatprep.subr.mxu0 0.0
  %150 = vmatpush1.msra.mxu0 0.0
  %151 = vmatprep.subr.mxu0 0.0
  %152 = vmatpush1.msra.mxu0 0.0
  %153 = vmatprep.subr.mxu0 0.0
  %154 = vmatpush1.msra.mxu0 0.0
  %155 = vmatprep.subr.mxu0 0.0
  %156 = vmatpush1.msra.mxu0 0.0
  %157 = vmatprep.subr.mxu0 0.0
  %158 = vmatpush1.msra.mxu0 0.0
  %159 = vmatprep.subr.mxu0 0.0
  %160 = vmatpush1.msra.mxu0 0.0
  %161 = vmatprep.subr.mxu0 0.0
  %162 = vmatpush1.msra.mxu0 0.0
  %163 = vmatprep.subr.mxu0 0.0
  %164 = vmatpush1.msra.mxu0 0.0
  %165 = vmatprep.subr.mxu0 0.0
  %166 = vmatpush1.msra.mxu0 0.0
  %167 = vmatprep.subr.mxu0 0.0
  %168 = vmatpush1.msra.mxu0 0.0
  %169 = vmatprep.subr.mxu0 0.0
  %170 = vmatpush1.msra.mxu0 0.0
  %171 = vmatprep.subr.mxu0 0.0
  %172 = vmatpush1.msra.mxu0 0.0
  %173 = vmatprep.subr.mxu0 0.0
  %174 = vmatpush1.msra.mxu0 0.0
  %175 = vmatprep.subr.mxu0 0.0
  %176 = vmatpush1.msra.mxu0 0.0
  %177 = vmatprep.subr.mxu0 0.0
  %178 = vmatpush1.msra.mxu0 0.0
  %179 = vmatprep.subr.mxu0 0.0
  %180 = vmatpush1.msra.mxu0 0.0
  %181 = vmatprep.mubr.f32.mxu0 0.0
  %182 = vmatmul.mubr.f32.gmra.mrb[0].mxu0 %v94
  %v183 = vpop.f32.mrb[0].mxu0
  %v184 = vadd.f32 %v55, %v183
  %v185 = vpop.f32.mrb[0].mxu0
  %186 = vmatprep.mubr.f32.mxu0 0.0
  %187 = vmatmul.mubr.f32.gmra.mrb[0].mxu0 %v97
  %v188 = vpop.f32.mrb[0].mxu0
  %v189 = vadd.f32 %v60, %v188
  %v190 = vpop.f32.mrb[0].mxu0
  %191 = vmatprep.mubr.f32.mxu0 0.0
  %192 = vmatmul.mubr.f32.gmra.mrb[0].mxu0 %v100
  %v193 = vpop.f32.mrb[0].mxu0
  %v194 = vadd.f32 %v65, %v193
  %v195 = vpop.f32.mrb[0].mxu0
  %196 = vmatprep.mubr.f32.mxu0 0.0
  %197 = vmatmul.mubr.f32.gmra.mrb[0].mxu0 %v103
  %v198 = vpop.f32.mrb[0].mxu0
  %v199 = vadd.f32 %v70, %v198
  %v200 = vpop.f32.mrb[0].mxu0
  %201 = vmatprep.mubr.f32.mxu0 0.0
  %202 = vmatmul.mubr.f32.gmra.mrb[0].mxu0 %v106
  %v203 = vpop.f32.mrb[0].mxu0
  %v204 = vadd.f32 %v75, %v203
  %v205 = vpop.f32.mrb[0].mxu0
  %206 = vmatprep.mubr.f32.mxu0 0.0
  %207 = vmatmul.mubr.f32.gmra.mrb[0].mxu0 %v109
  %v208 = vpop.f32.mrb[0].mxu0
  %v209 = vadd.f32 %v80, %v208
  %v210 = vpop.f32.mrb[0].mxu0
  %211 = vmatprep.mubr.f32.mxu0 0.0
  %212 = vmatmul.mubr.f32.gmra.mrb[0].mxu0 %v112
  %v213 = vpop.f32.mrb[0].mxu0
  %v214 = vadd.f32 %v85, %v213
  %v215 = vpop.f32.mrb[0].mxu0
  %216 = vmatprep.mubr.f32.mxu0 0.0
  %217 = vmatmul.mubr.f32.gmra.mrb[0].mxu0 %v115
  %v218 = vpop.f32.mrb[0].mxu0
  %v219 = vadd.f32 %v90, %v218
  %v220 = vpop.f32.mrb[0].mxu0
  %221 = vdwg.mxu0
  %v222 = vmax.f32 %v184, 0.0
  %v223 = vmax.f32 %v189, 0.0
  %v224 = vmax.f32 %v194, 0.0
  %v225 = vmax.f32 %v199, 0.0
  %v226 = vmax.f32 %v204, 0.0
  %v227 = vmax.f32 %v209, 0.0
  %v228 = vmax.f32 %v214, 0.0
  %v229 = vmax.f32 %v219, 0.0
  %v230 = vld [vmem:[%s4] sm:$0xff]
  %v231 = vld [vmem:[%s4 + $0x8] sm:$0xff]
  %v232 = vld [vmem:[%s4 + $0x10] sm:$0xff]
  %v233 = vld [vmem:[%s4 + $0x18] sm:$0xff]
  %v234 = vld [vmem:[%s5] sm:$0xff]
  %v235 = vld [vmem:[%s5 + $0x8] sm:$0xff]
  %v236 = vld [vmem:[%s5 + $0x10] sm:$0xff]
  %v237 = vld [vmem:[%s5 + $0x18] sm:$0xff]
  %239 = vset.pattern.permute.xlu0 0
  %240 = vperm.xlu0 %239, %v234
  %v241 = vpop.permute.xlu0 %240
  %244 = vset.pattern.permute.xlu0 0
  %245 = vperm.xlu0 %244, %v235
  %v246 = vpop.permute.xlu0 %245
  %249 = vset.pattern.permute.xlu0 0
  %250 = vperm.xlu0 %249, %v236
  %v251 = vpop.permute.xlu0 %250
  %254 = vset.pattern.permute.xlu0 0
  %255 = vperm.xlu0 %254, %v237
  %v256 = vpop.permute.xlu0 %255
  %vm258 = vcmask 523264
  %v260 = vsel %vm258, %v230, 0
  %v263 = vsel %vm258, %v231, 0
  %v266 = vsel %vm258, %v232, 0
  %v269 = vsel %vm258, %v233, 0
  %271 = vmatprep.subr.mxu0 0.0
  %272 = vmatpush1.msra.mxu0 %v222
  %273 = vmatprep.subr.mxu0 0.0
  %274 = vmatpush1.msra.mxu0 %v223
  %275 = vmatprep.subr.mxu0 0.0
  %276 = vmatpush1.msra.mxu0 %v224
  %277 = vmatprep.subr.mxu0 0.0
  %278 = vmatpush1.msra.mxu0 %v225
  %279 = vmatprep.subr.mxu0 0.0
  %280 = vmatpush1.msra.mxu0 %v226
  %281 = vmatprep.subr.mxu0 0.0
  %282 = vmatpush1.msra.mxu0 %v227
  %283 = vmatprep.subr.mxu0 0.0
  %284 = vmatpush1.msra.mxu0 %v228
  %285 = vmatprep.subr.mxu0 0.0
  %286 = vmatpush1.msra.mxu0 %v229
  %287 = vmatprep.subr.mxu0 0.0
  %288 = vmatpush1.msra.mxu0 0.0
  %289 = vmatprep.subr.mxu0 0.0
  %290 = vmatpush1.msra.mxu0 0.0
  %291 = vmatprep.subr.mxu0 0.0
  %292 = vmatpush1.msra.mxu0 0.0
  %293 = vmatprep.subr.mxu0 0.0
  %294 = vmatpush1.msra.mxu0 0.0
  %295 = vmatprep.subr.mxu0 0.0
  %296 = vmatpush1.msra.mxu0 0.0
  %297 = vmatprep.subr.mxu0 0.0
  %298 = vmatpush1.msra.mxu0 0.0
  %299 = vmatprep.subr.mxu0 0.0
  %300 = vmatpush1.msra.mxu0 0.0
  %301 = vmatprep.subr.mxu0 0.0
  %302 = vmatpush1.msra.mxu0 0.0
  %303 = vmatprep.subr.mxu0 0.0
  %304 = vmatpush1.msra.mxu0 0.0
  %305 = vmatprep.subr.mxu0 0.0
  %306 = vmatpush1.msra.mxu0 0.0
  %307 = vmatprep.subr.mxu0 0.0
  %308 = vmatpush1.msra.mxu0 0.0
  %309 = vmatprep.subr.mxu0 0.0
  %310 = vmatpush1.msra.mxu0 0.0
  %311 = vmatprep.subr.mxu0 0.0
  %312 = vmatpush1.msra.mxu0 0.0
  %313 = vmatprep.subr.mxu0 0.0
  %314 = vmatpush1.msra.mxu0 0.0
  %315 = vmatprep.subr.mxu0 0.0
  %316 = vmatpush1.msra.mxu0 0.0
  %317 = vmatprep.subr.mxu0 0.0
  %318 = vmatpush1.msra.mxu0 0.0
  %319 = vmatprep.subr.mxu0 0.0
  %320 = vmatpush1.msra.mxu0 0.0
  %321 = vmatprep.subr.mxu0 0.0
  %322 = vmatpush1.msra.mxu0 0.0
  %323 = vmatprep.subr.mxu0 0.0
  %324 = vmatpush1.msra.mxu0 0.0
  %325 = vmatprep.subr.mxu0 0.0
  %326 = vmatpush1.msra.mxu0 0.0
  %327 = vmatprep.subr.mxu0 0.0
  %328 = vmatpush1.msra.mxu0 0.0
  %329 = vmatprep.subr.mxu0 0.0
  %330 = vmatpush1.msra.mxu0 0.0
  %331 = vmatprep.subr.mxu0 0.0
  %332 = vmatpush1.msra.mxu0 0.0
  %333 = vmatprep.subr.mxu0 0.0
  %334 = vmatpush1.msra.mxu0 0.0
  %335 = vmatprep.mubr.f32.mxu0 0.0
  %336 = vmatmul.mubr.f32.gmra.mrb[0].mxu0 %v260
  %v337 = vpop.f32.mrb[0].mxu0
  %v338 = vadd.f32 %v241, %v337
  %v339 = vpop.f32.mrb[0].mxu0
  %340 = vmatprep.mubr.f32.mxu0 0.0
  %341 = vmatmul.mubr.f32.gmra.mrb[0].mxu0 %v263
  %v342 = vpop.f32.mrb[0].mxu0
  %v343 = vadd.f32 %v246, %v342
  %v344 = vpop.f32.mrb[0].mxu0
  %345 = vmatprep.mubr.f32.mxu0 0.0
  %346 = vmatmul.mubr.f32.gmra.mrb[0].mxu0 %v266
  %v347 = vpop.f32.mrb[0].mxu0
  %v348 = vadd.f32 %v251, %v347
  %v349 = vpop.f32.mrb[0].mxu0
  %350 = vmatprep.mubr.f32.mxu0 0.0
  %351 = vmatmul.mubr.f32.gmra.mrb[0].mxu0 %v269
  %v352 = vpop.f32.mrb[0].mxu0
  %v353 = vadd.f32 %v256, %v352
  %v354 = vpop.f32.mrb[0].mxu0
  %355 = vdwg.mxu0
  %v356 = vmax.f32 %v338, 0.0
  %v357 = vmax.f32 %v343, 0.0
  %v358 = vmax.f32 %v348, 0.0
  %v359 = vmax.f32 %v353, 0.0
  %v360 = vld [vmem:[%s6] sm:$0x3]
  %v361 = vld [vmem:[%s7] sm:$0x3]
  %363 = vset.pattern.permute.xlu0 0
  %364 = vperm.xlu0 %363, %v361
  %v365 = vpop.permute.xlu0 %364
  %vm367 = vcmask 261120
  %v369 = vsel %vm367, %v360, 0
  %371 = vmatprep.subr.mxu0 0.0
  %372 = vmatpush1.msra.mxu0 %v356
  %373 = vmatprep.subr.mxu0 0.0
  %374 = vmatpush1.msra.mxu0 %v357
  %375 = vmatprep.subr.mxu0 0.0
  %376 = vmatpush1.msra.mxu0 %v358
  %377 = vmatprep.subr.mxu0 0.0
  %378 = vmatpush1.msra.mxu0 %v359
  %379 = vmatprep.subr.mxu0 0.0
  %380 = vmatpush1.msra.mxu0 0.0
  %381 = vmatprep.subr.mxu0 0.0
  %382 = vmatpush1.msra.mxu0 0.0
  %383 = vmatprep.subr.mxu0 0.0
  %384 = vmatpush1.msra.mxu0 0.0
  %385 = vmatprep.subr.mxu0 0.0
  %386 = vmatpush1.msra.mxu0 0.0
  %387 = vmatprep.subr.mxu0 0.0
  %388 = vmatpush1.msra.mxu0 0.0
  %389 = vmatprep.subr.mxu0 0.0
  %390 = vmatpush1.msra.mxu0 0.0
  %391 = vmatprep.subr.mxu0 0.0
  %392 = vmatpush1.msra.mxu0 0.0
  %393 = vmatprep.subr.mxu0 0.0
  %394 = vmatpush1.msra.mxu0 0.0
  %395 = vmatprep.subr.mxu0 0.0
  %396 = vmatpush1.msra.mxu0 0.0
  %397 = vmatprep.subr.mxu0 0.0
  %398 = vmatpush1.msra.mxu0 0.0
  %399 = vmatprep.subr.mxu0 0.0
  %400 = vmatpush1.msra.mxu0 0.0
  %401 = vmatprep.subr.mxu0 0.0
  %402 = vmatpush1.msra.mxu0 0.0
  %403 = vmatprep.subr.mxu0 0.0
  %404 = vmatpush1.msra.mxu0 0.0
  %405 = vmatprep.subr.mxu0 0.0
  %406 = vmatpush1.msra.mxu0 0.0
  %407 = vmatprep.subr.mxu0 0.0
  %408 = vmatpush1.msra.mxu0 0.0
  %409 = vmatprep.subr.mxu0 0.0
  %410 = vmatpush1.msra.mxu0 0.0
  %411 = vmatprep.subr.mxu0 0.0
  %412 = vmatpush1.msra.mxu0 0.0
  %413 = vmatprep.subr.mxu0 0.0
  %414 = vmatpush1.msra.mxu0 0.0
  %415 = vmatprep.subr.mxu0 0.0
  %416 = vmatpush1.msra.mxu0 0.0
  %417 = vmatprep.subr.mxu0 0.0
  %418 = vmatpush1.msra.mxu0 0.0
  %419 = vmatprep.subr.mxu0 0.0
  %420 = vmatpush1.msra.mxu0 0.0
  %421 = vmatprep.subr.mxu0 0.0
  %422 = vmatpush1.msra.mxu0 0.0
  %423 = vmatprep.subr.mxu0 0.0
  %424 = vmatpush1.msra.mxu0 0.0
  %425 = vmatprep.subr.mxu0 0.0
  %426 = vmatpush1.msra.mxu0 0.0
  %427 = vmatprep.subr.mxu0 0.0
  %428 = vmatpush1.msra.mxu0 0.0
  %429 = vmatprep.subr.mxu0 0.0
  %430 = vmatpush1.msra.mxu0 0.0
  %431 = vmatprep.subr.mxu0 0.0
  %432 = vmatpush1.msra.mxu0 0.0
  %433 = vmatprep.subr.mxu0 0.0
  %434 = vmatpush1.msra.mxu0 0.0
  %435 = vmatprep.mubr.f32.mxu0 0.0
  %436 = vmatmul.mubr.f32.gmra.mrb[0].mxu0 %v369
  %v437 = vpop.f32.mrb[0].mxu0
  %v438 = vadd.f32 %v365, %v437
  %v439 = vpop.f32.mrb[0].mxu0
  %440 = vdwg.mxu0
  %v441 = vxor.u32 %v438, 2147483648
  %v442 = vmul.f32 %v441, 1.442695
  %v443 = vpow.pop %v442
  %v444 = vadd.f32 %v443, 1.0
  %v445 = vrcp.pop %v444
  %v446 = vmul.f32 1.0, %v445
  %v448 = vrot.slane %v446, 1
  %v450 = vmul.f32 %v446, %v448
  %vm451 = vcmask 1040384
  %v452 = vsel %vm451, %v450, %v446
  %453 = vst [vmem:[%s8] sm:$0x3] %v452
  %v454 = vld [vmem:[%s1] sm:$0x7]
  %v455 = vlog2.pop %v450
  %v456 = vmul.f32 %v455, 0.6931472
  %v457 = vmax.f32 %v456, -100.0
  %v458 = vsub.f32 1.0, %v450
  %v459 = vlog2.pop %v458
  %v460 = vmul.f32 %v459, 0.6931472
  %v461 = vmax.f32 %v460, -100.0
  %v462 = vmul.f32 %v454, %v457
  %v463 = vsub.f32 1.0, %v454
  %v464 = vmul.f32 %v463, %v461
  %v465 = vadd.f32 %v462, %v464
  %v467 = vrot.slane %v465, 6
  %v469 = vmul.f32 %v454, %v467
  %v470 = vlog2.pop %v446
  %v471 = vmul.f32 %v470, 0.6931472
  %v472 = vmax.f32 %v471, -100.0
  %v473 = vsub.f32 1.0, %v446
  %v474 = vlog2.pop %v473
  %v475 = vmul.f32 %v474, 0.6931472
  %v476 = vmax.f32 %v475, -100.0
  %v477 = vmul.f32 %v454, %v472
  %v478 = vmul.f32 %v463, %v476
  %v479 = vadd.f32 %v477, %v478
  %v481 = vrot.slane %v479, 7
  %v483 = vmul.f32 %v454, %v481
  %v485 = vrot.slane %v469, 2
  %v488 = vrot.slane %v483, 1
  %v490 = vsel %vm451, %v485, %v488
  %vm491 = vcmask 1041408
  %v492 = vsel %vm491, %v490, 0.0
  %493 = vadd.xlane.f32.xlu0 %v492
  %v494 = vpop.xlane.xlu0 %493
  %vm495 = vcmask 1024
  %496 = vst.msk [vmem:[%s9] sm:$0x3] %vm495, %v494
  // Predicated region
  $region34: #{essm_forward.1} parent=0 // pred_check
    _
  $region35: #{essm_forward.1} parent=0 // pred_check_branch
    %498 = sbr.rel (0) target = $region37
  $region36: #{essm_forward.1} parent=0 // pred_region
    _
  $region37: #{essm_forward.1} parent=0 // pred_fallthru
    _
  // Predicated region
  $region38: #{essm_forward.1} parent=0 // pred_check
    _
  $region39: #{essm_forward.1} parent=0 // pred_check_branch
    %500 = sbr.rel (0) target = $region41
  $region40: #{essm_forward.1} parent=0 // pred_region
    _
  $region41: #{essm_forward.1} parent=0 // pred_fallthru
    _
  // Predicated region
  $region42: #{essm_forward.1} parent=0 // pred_check
    _
  $region43: #{essm_forward.1} parent=0 // pred_check_branch
    %502 = sbr.rel (0) target = $region45
  $region44: #{essm_forward.1} parent=0 // pred_region
    _
  $region45: #{essm_forward.1} parent=0 // pred_fallthru
    _
  // Predicated region
  $region46: #{essm_forward.1} parent=0 // pred_check
    _
  $region47: #{essm_forward.1} parent=0 // pred_check_branch
    %504 = sbr.rel (0) target = $region49
  $region48: #{essm_forward.1} parent=0 // pred_region
    _
  $region49: #{essm_forward.1} parent=0 // pred_fallthru
    _

</llo_original>
